<compile_context>
chip_gen: v6e
topology: v6e:2x2x1
jax: 0.10.0
libtpu: 0.0.40
codegen_flags: <defaults>
</compile_context>

<pallas_src>
import functools

import jax
import jax.numpy as jnp
import numpy as np
from jax import lax
from jax.experimental import pallas as pl
from jax.experimental.pallas import tpu as pltpu

_LANE = 128


def _round_up(x, m):
    return ((x + m - 1) // m) * m


def _lane_partial(x):
    """Reduce (R, TM) -> (R, 128) by summing aligned 128-lane chunks (VPU adds)."""
    _, tm = x.shape
    acc = x[:, 0:_LANE]
    for j in range(1, tm // _LANE):
        acc = acc + x[:, j * _LANE:(j + 1) * _LANE]
    return acc


def _pow_static(x, gamma):
    """x**gamma with gamma a static Python float; avoid exp/log for small ints."""
    g = float(gamma)
    if g == 0.0:
        return jnp.ones_like(x)
    if g == int(g) and 1 <= int(g) <= 8:
        out = x
        for _ in range(int(g) - 1):
            out = out * x
        return out
    return jnp.power(x, jnp.float32(g))


def _focal_loss_kernel(confp_ref, lab_ref, locp_ref, loct_ref,
                       conf_out_ref, loc_out_ref, npos_out_ref,
                       *, alpha, gamma, eps, total_boxes):
    i = pl.program_id(0)
    tm = lab_ref.shape[1]
    k = confp_ref.shape[1]

    # In-kernel transposes -> lane-dense compute layout (boxes on the 128 lanes).
    p = jnp.transpose(confp_ref[...].astype(jnp.float32))    # (K, TM)
    lp = jnp.transpose(locp_ref[...].astype(jnp.float32))    # (4, TM)
    lt = jnp.transpose(loct_ref[...].astype(jnp.float32))    # (4, TM)
    y = lab_ref[...]                                          # (1, TM) int32

    # Validity mask for the ragged last tile (replaces wrapper-side padding).
    lane = lax.broadcasted_iota(jnp.int32, (1, tm), 1)
    valid = (i * tm + lane) < total_boxes                     # (1, TM)
    pos = jnp.logical_and(y > 0, valid)                       # (1, TM)

    # ---- localization: smooth-L1 summed over positive boxes ---------------
    z = jnp.abs(lp - lt)
    sl1 = jnp.where(z < 1.0, 0.5 * z * z, z - 0.5)            # (4, TM)
    loc_contrib = jnp.where(pos, sl1, 0.0)                    # (4, TM)

    # ---- focal confidence loss ---------------------------------------------
    cls = lax.broadcasted_iota(jnp.int32, (k, tm), 0)         # class id per sublane
    t = jnp.logical_and(pos, cls == y)                        # (K, TM) one-hot
    alpha_f = jnp.where(t, alpha, 1.0 - alpha)
    fw = _pow_static(jnp.where(t, 1.0 - p, p), gamma)
    bce = -jnp.log(jnp.where(t, eps + p, 1.0 - p + eps))      # single log / element
    conf_contrib = jnp.where(valid, alpha_f * fw * bce, 0.0)  # (K, TM)

    # ---- lane-dense per-tile partials (final tiny reduce is in the wrapper) -
    conf_out_ref[...] = _lane_partial(conf_contrib).reshape(1, k, _LANE)
    loc_out_ref[...] = _lane_partial(loc_contrib).reshape(1, 4, _LANE)
    npos_out_ref[...] = _lane_partial(pos.astype(jnp.float32)).reshape(1, 1, _LANE)


def focal_loss(loc_preds, loc_targets, conf_preds, conf_targets, *,
               num_classes=None, alpha=0.5, beta=0.5, gamma=2.0, eps=1e-6,
               box_tile=8192, vmem_budget_bytes=12 * 1024 * 1024):
    """Forward pass of the PyTorch FocalLoss module.

    loc_preds/loc_targets: (N, D, 4); conf_preds: (N, D, K) probabilities;
    conf_targets: (N, D) int labels (0 = background).
    Returns (beta*conf_loss + (1-beta)*loc_loss, conf_loss, loc_loss).
    """
    N, D, _ = loc_preds.shape
    K = conf_preds.shape[-1]
    if num_classes is not None:
        assert K == int(num_classes) + 1
    M = N * D

    # Free reshapes only (contiguous views): no HBM transpose, no pad, no cast.
    conf2 = conf_preds.reshape(M, K)
    locp2 = loc_preds.reshape(M, 4)
    loct2 = loc_targets.reshape(M, 4)
    lab2 = conf_targets.reshape(1, M).astype(jnp.int32)   # lane-dense label view

    # K-aware tile size: double-buffered (lane-padded) input blocks must fit the
    # VMEM budget.  Native-layout blocks pad their minor dim to 128 lanes.
    def _padded_row_bytes(n, itemsize):
        return _round_up(max(n, 1), _LANE) * itemsize
    bytes_per_box = (_padded_row_bytes(K, conf2.dtype.itemsize)
                     + _padded_row_bytes(4, locp2.dtype.itemsize)
                     + _padded_row_bytes(4, loct2.dtype.itemsize)
                     + 8 * lab2.dtype.itemsize)            # (1, TM) label block
    tm_vmem = max(_LANE, (vmem_budget_bytes // (2 * bytes_per_box)) // _LANE * _LANE)
    TM = min(_round_up(M, _LANE), _round_up(int(box_tile), _LANE), tm_vmem)
    TM = max(TM, _LANE)
    G = pl.cdiv(M, TM)

    kernel = functools.partial(_focal_loss_kernel, alpha=float(alpha),
                               gamma=float(gamma), eps=float(eps), total_boxes=M)

    grid_spec = pltpu.PrefetchScalarGridSpec(
        num_scalar_prefetch=0,
        grid=(G,),
        in_specs=[
            pl.BlockSpec((TM, K), lambda i: (i, 0)),   # conf probs (native layout)
            pl.BlockSpec((1, TM), lambda i: (0, i)),   # labels (lane-dense view)
            pl.BlockSpec((TM, 4), lambda i: (i, 0)),   # loc preds
            pl.BlockSpec((TM, 4), lambda i: (i, 0)),   # loc targets
        ],
        out_specs=[
            pl.BlockSpec((1, K, _LANE), lambda i: (i, 0, 0)),   # focal partials
            pl.BlockSpec((1, 4, _LANE), lambda i: (i, 0, 0)),   # loc partials
            pl.BlockSpec((1, 1, _LANE), lambda i: (i, 0, 0)),   # num-pos partials
        ],
    )

    # TODO(synk): on v7x, verify the "parallel" axis shards across both
    # TensorCores; switch to pltpu.CORE_PARALLEL / core_map if a profile shows
    # only one TC active.
    conf_part, loc_part, npos_part = pl.pallas_call(
        kernel,
        out_shape=(
            jax.ShapeDtypeStruct((G, K, _LANE), jnp.float32),
            jax.ShapeDtypeStruct((G, 4, _LANE), jnp.float32),
            jax.ShapeDtypeStruct((G, 1, _LANE), jnp.float32),
        ),
        grid_spec=grid_spec,
        compiler_params=pltpu.CompilerParams(
            dimension_semantics=("parallel",),
            vmem_limit_bytes=32 * 1024 * 1024),
    )(conf2, lab2, locp2, loct2)

    nm = jnp.sum(npos_part)
    loc_sum = jnp.sum(loc_part)
    conf_sum = jnp.sum(conf_part)
    safe = jnp.where(nm > 0, nm, 1.0)
    loc_loss = jnp.where(nm > 0, loc_sum / safe, 0.0)
    # TODO(synk): torch divides conf_loss by num_matched==0 (-> nan/inf) in that
    # degenerate case; we return 0.0 instead of emulating the NaN.
    conf_loss = jnp.where(nm > 0, conf_sum / safe, 0.0)
    total = beta * conf_loss + (1.0 - beta) * loc_loss
    return total, conf_loss, loc_loss


def _reference(loc_p, loc_t, conf_p, conf_t, *, alpha, beta, gamma, eps):
    """Pure-JAX reproduction of the PyTorch FocalLoss.forward."""
    pos = conf_t > 0
    nm = jnp.sum(pos).astype(jnp.float32)

    z = jnp.abs(loc_p - loc_t)
    sl1 = jnp.where(z < 1.0, 0.5 * z * z, z - 0.5)
    loc_loss = jnp.sum(jnp.where(pos[..., None], sl1, 0.0))

    K = conf_p.shape[-1]
    cp = conf_p.reshape(-1, K)
    ct = conf_t.reshape(-1)
    posr = pos.reshape(-1)
    targets = jax.nn.one_hot(ct, K, dtype=jnp.float32) * posr[:, None].astype(jnp.float32)
    alpha_f = jnp.where(targets == 1.0, alpha, 1.0 - alpha)
    fw = jnp.where(targets == 1.0, 1.0 - cp, cp)
    fw = alpha_f * fw ** gamma
    bce = -(targets * jnp.log(eps + cp) + (1.0 - targets) * jnp.log(1.0 - cp + eps))
    conf_loss = jnp.sum(fw * bce)

    safe = jnp.where(nm > 0, nm, 1.0)
    loc_loss = jnp.where(nm > 0, loc_loss / safe, 0.0)
    conf_loss = jnp.where(nm > 0, conf_loss / safe, 0.0)
    return beta * conf_loss + (1.0 - beta) * loc_loss, conf_loss, loc_loss


if __name__ == "__main__":
    # Small shapes; D=192 with box_tile=256 exercises the ragged-tile mask path.
    N, D, K = 2, 192, 8
    alpha, beta, gamma, eps = 0.5, 0.5, 2.0, 1e-6

    key = jax.random.PRNGKey(0)
    k1, k2, k3, k4, k5 = jax.random.split(key, 5)
    loc_preds = jax.random.normal(k1, (N, D, 4), dtype=jnp.float32)
    loc_targets = jax.random.normal(k2, (N, D, 4), dtype=jnp.float32)
    # The module applies BCE directly on conf_preds, so they are probabilities.
    conf_preds = jax.nn.sigmoid(jax.random.normal(k3, (N, D, K), dtype=jnp.float32))
    labels = jax.random.randint(k4, (N, D), 1, K, dtype=jnp.int32)
    is_bg = jax.random.uniform(k5, (N, D)) < 0.7
    conf_targets = jnp.where(is_bg, 0, labels).astype(jnp.int32)

    total, conf_l, loc_l = focal_loss(
        loc_preds, loc_targets, conf_preds, conf_targets,
        num_classes=K - 1, alpha=alpha, beta=beta, gamma=gamma, eps=eps,
        box_tile=256)
    jax.block_until_ready(total)

    r_total, r_conf, r_loc = _reference(
        loc_preds, loc_targets, conf_preds, conf_targets,
        alpha=alpha, beta=beta, gamma=gamma, eps=eps)

    np.testing.assert_allclose(np.array(total), np.array(r_total), rtol=1e-4, atol=1e-5)
    np.testing.assert_allclose(np.array(conf_l), np.array(r_conf), rtol=1e-4, atol=1e-5)
    np.testing.assert_allclose(np.array(loc_l), np.array(r_loc), rtol=1e-4, atol=1e-5)

    print("KERNEL_OK")
</pallas_src>

<mosaic_0001>
module attributes {stable_mosaic.version = 11 : i64} {
  func.func @_focal_loss_kernel(%arg0: i32, %arg1: memref<256x8xf32, #tpu.memory_space<vmem>>, %arg2: memref<1x256xi32, #tpu.memory_space<vmem>>, %arg3: memref<256x4xf32, #tpu.memory_space<vmem>>, %arg4: memref<256x4xf32, #tpu.memory_space<vmem>>, %arg5: memref<1x8x128xf32, #tpu.memory_space<vmem>>, %arg6: memref<1x4x128xf32, #tpu.memory_space<vmem>>, %arg7: memref<1x1x128xf32, #tpu.memory_space<vmem>>) attributes {dimension_semantics = [#tpu.dimension_semantics<parallel>], iteration_bounds = array<i64: 2>, scalar_prefetch = 0 : i64, scratch_operands = 0 : i64, tpu.core_type = #tpu.core_type<tc>, window_params = [{transform_indices = @transform_0, window_bounds = array<i64: 256, 8>}, {transform_indices = @transform_1, window_bounds = array<i64: 1, 256>}, {transform_indices = @transform_2, window_bounds = array<i64: 256, 4>}, {transform_indices = @transform_3, window_bounds = array<i64: 256, 4>}, {transform_indices = @transform_4, window_bounds = array<i64: 1, 8, 128>}, {transform_indices = @transform_5, window_bounds = array<i64: 1, 4, 128>}, {transform_indices = @transform_6, window_bounds = array<i64: 1, 1, 128>}]} {
    %c0 = arith.constant 0 : index
    %c0_0 = arith.constant 0 : index
    %0 = vector.load %arg1[%c0, %c0_0] : memref<256x8xf32, #tpu.memory_space<vmem>>, vector<256x8xf32>
    %1 = tpu.transpose %0, [1, 0] : vector<256x8xf32> -> vector<8x256xf32>
    %c0_1 = arith.constant 0 : index
    %c0_2 = arith.constant 0 : index
    %2 = vector.load %arg3[%c0_1, %c0_2] : memref<256x4xf32, #tpu.memory_space<vmem>>, vector<256x4xf32>
    %3 = tpu.transpose %2, [1, 0] : vector<256x4xf32> -> vector<4x256xf32>
    %c0_3 = arith.constant 0 : index
    %c0_4 = arith.constant 0 : index
    %4 = vector.load %arg4[%c0_3, %c0_4] : memref<256x4xf32, #tpu.memory_space<vmem>>, vector<256x4xf32>
    %5 = tpu.transpose %4, [1, 0] : vector<256x4xf32> -> vector<4x256xf32>
    %c0_5 = arith.constant 0 : index
    %c0_6 = arith.constant 0 : index
    %6 = vector.load %arg2[%c0_5, %c0_6] : memref<1x256xi32, #tpu.memory_space<vmem>>, vector<1x256xi32>
    %7 = tpu.iota {dimensions = array<i32: 1>} : vector<1x256xi32>
    %c256_i32 = arith.constant 256 : i32
    %8 = arith.muli %arg0, %c256_i32 : i32
    %9 = vector.broadcast %8 : i32 to vector<1x256xi32>
    %10 = arith.addi %9, %7 : vector<1x256xi32>
    %c384_i32 = arith.constant 384 : i32
    %11 = vector.broadcast %c384_i32 : i32 to vector<1x256xi32>
    %12 = arith.cmpi slt, %10, %11 : vector<1x256xi32>
    %c0_i32 = arith.constant 0 : i32
    %13 = vector.broadcast %c0_i32 : i32 to vector<1x256xi32>
    %14 = arith.cmpi sgt, %6, %13 : vector<1x256xi32>
    %15 = arith.andi %14, %12 : vector<1x256xi1>
    %16 = arith.subf %3, %5 : vector<4x256xf32>
    %17 = math.absf %16 : vector<4x256xf32>
    %cst = arith.constant 1.000000e+00 : f32
    %18 = vector.broadcast %cst : f32 to vector<4x256xf32>
    %19 = arith.cmpf olt, %17, %18 : vector<4x256xf32>
    %cst_7 = arith.constant 5.000000e-01 : f32
    %20 = vector.broadcast %cst_7 : f32 to vector<4x256xf32>
    %21 = arith.mulf %20, %17 : vector<4x256xf32>
    %22 = arith.mulf %21, %17 : vector<4x256xf32>
    %cst_8 = arith.constant 5.000000e-01 : f32
    %23 = vector.broadcast %cst_8 : f32 to vector<4x256xf32>
    %24 = arith.subf %17, %23 : vector<4x256xf32>
    %25 = arith.select %19, %22, %24 : vector<4x256xi1>, vector<4x256xf32>
    %cst_9 = arith.constant 0.000000e+00 : f32
    %26 = vector.shape_cast %15 : vector<1x256xi1> to vector<1x256xi1>
    %27 = vector.broadcast %26 : vector<1x256xi1> to vector<4x256xi1>
    %28 = vector.broadcast %cst_9 : f32 to vector<4x256xf32>
    %29 = arith.select %27, %25, %28 : vector<4x256xi1>, vector<4x256xf32>
    %30 = tpu.iota {dimensions = array<i32: 0>} : vector<8x256xi32>
    %31 = vector.broadcast %6 : vector<1x256xi32> to vector<8x256xi32>
    %32 = arith.cmpi eq, %30, %31 : vector<8x256xi32>
    %33 = vector.broadcast %15 : vector<1x256xi1> to vector<8x256xi1>
    %34 = arith.andi %33, %32 : vector<8x256xi1>
    %cst_10 = arith.constant 5.000000e-01 : f32
    %cst_11 = arith.constant 5.000000e-01 : f32
    %35 = vector.broadcast %cst_10 : f32 to vector<8x256xf32>
    %36 = vector.broadcast %cst_11 : f32 to vector<8x256xf32>
    %37 = arith.select %34, %35, %36 : vector<8x256xi1>, vector<8x256xf32>
    %cst_12 = arith.constant 1.000000e+00 : f32
    %38 = vector.broadcast %cst_12 : f32 to vector<8x256xf32>
    %39 = arith.subf %38, %1 : vector<8x256xf32>
    %40 = arith.select %34, %39, %1 : vector<8x256xi1>, vector<8x256xf32>
    %41 = arith.mulf %40, %40 : vector<8x256xf32>
    %cst_13 = arith.constant 9.99999997E-7 : f32
    %42 = vector.broadcast %cst_13 : f32 to vector<8x256xf32>
    %43 = arith.addf %42, %1 : vector<8x256xf32>
    %cst_14 = arith.constant 1.000000e+00 : f32
    %44 = vector.broadcast %cst_14 : f32 to vector<8x256xf32>
    %45 = arith.subf %44, %1 : vector<8x256xf32>
    %cst_15 = arith.constant 9.99999997E-7 : f32
    %46 = vector.broadcast %cst_15 : f32 to vector<8x256xf32>
    %47 = arith.addf %45, %46 : vector<8x256xf32>
    %48 = arith.select %34, %43, %47 : vector<8x256xi1>, vector<8x256xf32>
    %49 = math.log %48 : vector<8x256xf32>
    %cst_16 = arith.constant 0.000000e+00 : f32
    %50 = vector.broadcast %cst_16 : f32 to vector<8x256xf32>
    %51 = arith.subf %50, %49 : vector<8x256xf32>
    %52 = arith.mulf %37, %41 : vector<8x256xf32>
    %53 = arith.mulf %52, %51 : vector<8x256xf32>
    %cst_17 = arith.constant 0.000000e+00 : f32
    %54 = vector.shape_cast %12 : vector<1x256xi1> to vector<1x256xi1>
    %55 = vector.broadcast %54 : vector<1x256xi1> to vector<8x256xi1>
    %56 = vector.broadcast %cst_17 : f32 to vector<8x256xf32>
    %57 = arith.select %55, %53, %56 : vector<8x256xi1>, vector<8x256xf32>
    %58 = vector.extract_strided_slice %57 {offsets = [0, 0], sizes = [8, 128], strides = [1, 1]} : vector<8x256xf32> to vector<8x128xf32>
    %59 = vector.extract_strided_slice %57 {offsets = [0, 128], sizes = [8, 128], strides = [1, 1]} : vector<8x256xf32> to vector<8x128xf32>
    %60 = arith.addf %58, %59 : vector<8x128xf32>
    %61 = vector.shape_cast %60 : vector<8x128xf32> to vector<1x8x128xf32>
    %c0_18 = arith.constant 0 : index
    %c0_19 = arith.constant 0 : index
    %c0_20 = arith.constant 0 : index
    %62 = vector.load %arg5[%c0_18, %c0_19, %c0_20] : memref<1x8x128xf32, #tpu.memory_space<vmem>>, vector<1x8x128xf32>
    tpu.vector_store %arg5[%c0_18, %c0_19, %c0_20], %61 {strides = array<i32>} : memref<1x8x128xf32, #tpu.memory_space<vmem>>, vector<1x8x128xf32>,
    %63 = vector.extract_strided_slice %29 {offsets = [0, 0], sizes = [4, 128], strides = [1, 1]} : vector<4x256xf32> to vector<4x128xf32>
    %64 = vector.extract_strided_slice %29 {offsets = [0, 128], sizes = [4, 128], strides = [1, 1]} : vector<4x256xf32> to vector<4x128xf32>
    %65 = arith.addf %63, %64 : vector<4x128xf32>
    %66 = vector.shape_cast %65 : vector<4x128xf32> to vector<1x4x128xf32>
    %c0_21 = arith.constant 0 : index
    %c0_22 = arith.constant 0 : index
    %c0_23 = arith.constant 0 : index
    %67 = vector.load %arg6[%c0_21, %c0_22, %c0_23] : memref<1x4x128xf32, #tpu.memory_space<vmem>>, vector<1x4x128xf32>
    tpu.vector_store %arg6[%c0_21, %c0_22, %c0_23], %66 {strides = array<i32>} : memref<1x4x128xf32, #tpu.memory_space<vmem>>, vector<1x4x128xf32>,
    %68 = arith.extui %15 : vector<1x256xi1> to vector<1x256xi32>
    %69 = arith.sitofp %68 : vector<1x256xi32> to vector<1x256xf32>
    %70 = vector.extract_strided_slice %69 {offsets = [0, 0], sizes = [1, 128], strides = [1, 1]} : vector<1x256xf32> to vector<1x128xf32>
    %71 = vector.extract_strided_slice %69 {offsets = [0, 128], sizes = [1, 128], strides = [1, 1]} : vector<1x256xf32> to vector<1x128xf32>
    %72 = arith.addf %70, %71 : vector<1x128xf32>
    %73 = vector.shape_cast %72 : vector<1x128xf32> to vector<1x1x128xf32>
    %c0_24 = arith.constant 0 : index
    %c0_25 = arith.constant 0 : index
    %c0_26 = arith.constant 0 : index
    %74 = vector.load %arg7[%c0_24, %c0_25, %c0_26] : memref<1x1x128xf32, #tpu.memory_space<vmem>>, vector<1x1x128xf32>
    tpu.vector_store %arg7[%c0_24, %c0_25, %c0_26], %73 {strides = array<i32>} : memref<1x1x128xf32, #tpu.memory_space<vmem>>, vector<1x1x128xf32>,
    return
  }
  func.func @transform_0(%arg0: i32) -> (i32, i32) {
    %c0_i32 = arith.constant 0 : i32
    %c0_i32_0 = arith.constant 0 : i32
    return %arg0, %c0_i32 : i32, i32
  }
  func.func @transform_1(%arg0: i32) -> (i32, i32) {
    %c0_i32 = arith.constant 0 : i32
    %c0_i32_0 = arith.constant 0 : i32
    return %c0_i32, %arg0 : i32, i32
  }
  func.func @transform_2(%arg0: i32) -> (i32, i32) {
    %c0_i32 = arith.constant 0 : i32
    %c0_i32_0 = arith.constant 0 : i32
    return %arg0, %c0_i32 : i32, i32
  }
  func.func @transform_3(%arg0: i32) -> (i32, i32) {
    %c0_i32 = arith.constant 0 : i32
    %c0_i32_0 = arith.constant 0 : i32
    return %arg0, %c0_i32 : i32, i32
  }
  func.func @transform_4(%arg0: i32) -> (i32, i32, i32) {
    %c0_i32 = arith.constant 0 : i32
    %c0_i32_0 = arith.constant 0 : i32
    %c0_i32_1 = arith.constant 0 : i32
    return %arg0, %c0_i32, %c0_i32_0 : i32, i32, i32
  }
  func.func @transform_5(%arg0: i32) -> (i32, i32, i32) {
    %c0_i32 = arith.constant 0 : i32
    %c0_i32_0 = arith.constant 0 : i32
    %c0_i32_1 = arith.constant 0 : i32
    return %arg0, %c0_i32, %c0_i32_0 : i32, i32, i32
  }
  func.func @transform_6(%arg0: i32) -> (i32, i32, i32) {
    %c0_i32 = arith.constant 0 : i32
    %c0_i32_0 = arith.constant 0 : i32
    %c0_i32_1 = arith.constant 0 : i32
    return %arg0, %c0_i32, %c0_i32_0 : i32, i32, i32
  }
}

</mosaic_0001>

<llo_original>
// kernel: tpu_custom_call.1
$region0: #{tpu_custom_call.1}
  #allocation0 [shape = 'u32[]', space=smem, size = 0x4, offset = 0x4, fixed_abs, tag = 'smem constant byte address 0x4 - core index']
  #allocation1 [shape = 'u32[144,128]{1,0:T(1,128)}', space=vmem, size = 0x12000, scoped, tag = 'internal scratch']
  %s0 = inlined_call_operand.vmem [shape: f32[384,8], index: 0, kind: input, shape index: {}]
  %s1 = inlined_call_operand.vmem [shape: s32[1,384], index: 1, kind: input, shape index: {}]
  %s2 = inlined_call_operand.vmem [shape: f32[384,4], index: 2, kind: input, shape index: {}]
  %s3 = inlined_call_operand.vmem [shape: f32[384,4], index: 3, kind: input, shape index: {}]
  %s4 = inlined_call_operand.hbm [shape: f32[2,8,128], index: 4, kind: output, shape index: {0}]
  %s5 = inlined_call_operand.hbm [shape: f32[2,4,128], index: 5, kind: output, shape index: {1}]
  %s6 = inlined_call_operand.hbm [shape: f32[2,1,128], index: 6, kind: output, shape index: {2}]
  %7 = xla_tuple %s4, %s5, %s6
  %s8 = sld [smem:[#allocation0]]
  $region65: #{tpu_custom_call.1} parent=0
    _
  %s10 = ssub.s32 1, %s8
  %s11 = scalar_select 0, %s10, %s8
  $region1: #{tpu_custom_call.1} parent=0
    #allocation2 [shape = 'u8[8192]{0}', space=vmem, size = 0x2000, scoped, tag = 'output window, operand 0']
    #allocation3 [shape = 's32[2]{0}', space=sflag, size = 0x8, scoped, tag = 'scoped memory for tpu_custom_call.1']
    #allocation4 [shape = 'u8[4096]{0}', space=vmem, size = 0x1000, scoped, tag = 'output window, operand 1']
    #allocation5 [shape = 's32[2]{0}', space=sflag, size = 0x8, scoped, tag = 'scoped memory for tpu_custom_call.1']
    #allocation6 [shape = 'u8[1024]{0}', space=vmem, size = 0x400, scoped, tag = 'output window, operand 2']
    %12 = vsyncpa [#allocation3], 0
    %s13 = scalar_lea.sflag [#allocation3], 1
    %14 = vsyncpa %s13, 0
    %15 = vsyncpa [#allocation5], 0
    %s16 = scalar_lea.sflag [#allocation5], 1
    %17 = vsyncpa %s16, 0
    loop: start=0, step=1, limit=4
    $region2: #{tpu_custom_call.1} parent=1 // loop_pre_header
      _
    $region3: #{tpu_custom_call.1} parent=1 // loop_header
      %s19 = sphi 0, %s23
      %p20 = scmp.ge.s32.totalorder %s19, 4
      %s29 = sphi 0, %s31
      %s32 = sphi 0, %s29
      %s33 = sphi 0, %s32
      %s49 = sphi 0, %s33
      %s55 = sphi 0, %s57
      %s58 = sphi 0, %s55
      %s59 = sphi 0, %s58
      %s75 = sphi 0, %s59
      %s81 = sphi 0, %s83
      %s84 = sphi 0, %s81
      %s85 = sphi 0, %s84
      %s101 = sphi 0, %s85
      %s107 = sphi 0, %s109
      %s110 = sphi 0, %s107
      %s111 = sphi 0, %s110
      %s127 = sphi 0, %s111
      %s133 = sphi 0, %s135
      %s136 = sphi 0, %s133
      %s137 = sphi 0, %s136
      %s153 = sphi 0, %s137
      %s159 = sphi 0, %s161
      %s162 = sphi 0, %s159
      %s163 = sphi 0, %s162
      %s179 = sphi 0, %s163
      %s185 = sphi 0, %s187
      %s188 = sphi 0, %s185
      %s189 = sphi 0, %s188
      %s205 = sphi 0, %s189
    $region4: #{tpu_custom_call.1} parent=1 // loop_header_branch
      %22 = sbr.rel (%p20) target = $region8
    $region5: #{tpu_custom_call.1} parent=1 // loop_body
      %s24 = ssub.s32 %s19, 1
      %s25 = ssub.s32 %s19, 2
      %s26 = sadd.s32 %s19, 1
      %s27 = ssub.s32 %s19, %s26
      %p28 = scmp.eq.s32.totalorder %s27, 0
      %s30 = sadd.s32 %s29, 1
      %s31 = scalar_select %p28, %s29, %s30
      %p34 = pneg %p28
      %p35 = scmp.eq.s32.totalorder %s19, 1
      %p36 = por %p34, %p35
      %p37 = scmp.ne.s32.totalorder %s29, %s32
      %p38 = scmp.eq.s32.totalorder %s19, 0
      %p39 = por %p37, %p38
      %p40 = scmp.ne.s32.totalorder %s29, %s32
      %p41 = scmp.eq.s32.totalorder %s24, 1
      %p42 = por %p40, %p41
      %p43 = scmp.ne.s32.totalorder %s32, %s33
      %p44 = scmp.eq.s32.totalorder %s24, 0
      %p45 = por %p43, %p44
      %p46 = scmp.ne.s32.totalorder %s32, %s33
      %p47 = scmp.eq.s32.totalorder %s25, 1
      %p48 = por %p46, %p47
      %p50 = scmp.ne.s32.totalorder %s33, %s49
      %p51 = scmp.eq.s32.totalorder %s25, 0
      %p52 = por %p50, %p51
      %s53 = ssub.s32 %s19, %s26
      %p54 = scmp.eq.s32.totalorder %s53, 0
      %s56 = sadd.s32 %s55, 1
      %s57 = scalar_select %p54, %s55, %s56
      %p60 = pneg %p54
      %p61 = scmp.eq.s32.totalorder %s19, 1
      %p62 = por %p60, %p61
      %p63 = scmp.ne.s32.totalorder %s55, %s58
      %p64 = scmp.eq.s32.totalorder %s19, 0
      %p65 = por %p63, %p64
      %p66 = scmp.ne.s32.totalorder %s55, %s58
      %p67 = scmp.eq.s32.totalorder %s24, 1
      %p68 = por %p66, %p67
      %p69 = scmp.ne.s32.totalorder %s58, %s59
      %p70 = scmp.eq.s32.totalorder %s24, 0
      %p71 = por %p69, %p70
      %p72 = scmp.ne.s32.totalorder %s58, %s59
      %p73 = scmp.eq.s32.totalorder %s25, 1
      %p74 = por %p72, %p73
      %p76 = scmp.ne.s32.totalorder %s59, %s75
      %p77 = scmp.eq.s32.totalorder %s25, 0
      %p78 = por %p76, %p77
      %s79 = ssub.s32 %s19, %s26
      %p80 = scmp.eq.s32.totalorder %s79, 0
      %s82 = sadd.s32 %s81, 1
      %s83 = scalar_select %p80, %s81, %s82
      %p86 = pneg %p80
      %p87 = scmp.eq.s32.totalorder %s19, 1
      %p88 = por %p86, %p87
      %p89 = scmp.ne.s32.totalorder %s81, %s84
      %p90 = scmp.eq.s32.totalorder %s19, 0
      %p91 = por %p89, %p90
      %p92 = scmp.ne.s32.totalorder %s81, %s84
      %p93 = scmp.eq.s32.totalorder %s24, 1
      %p94 = por %p92, %p93
      %p95 = scmp.ne.s32.totalorder %s84, %s85
      %p96 = scmp.eq.s32.totalorder %s24, 0
      %p97 = por %p95, %p96
      %p98 = scmp.ne.s32.totalorder %s84, %s85
      %p99 = scmp.eq.s32.totalorder %s25, 1
      %p100 = por %p98, %p99
      %p102 = scmp.ne.s32.totalorder %s85, %s101
      %p103 = scmp.eq.s32.totalorder %s25, 0
      %p104 = por %p102, %p103
      %s105 = ssub.s32 %s19, %s26
      %p106 = scmp.eq.s32.totalorder %s105, 0
      %s108 = sadd.s32 %s107, 1
      %s109 = scalar_select %p106, %s107, %s108
      %p112 = pneg %p106
      %p113 = scmp.eq.s32.totalorder %s19, 1
      %p114 = por %p112, %p113
      %p115 = scmp.ne.s32.totalorder %s107, %s110
      %p116 = scmp.eq.s32.totalorder %s19, 0
      %p117 = por %p115, %p116
      %p118 = scmp.ne.s32.totalorder %s107, %s110
      %p119 = scmp.eq.s32.totalorder %s24, 1
      %p120 = por %p118, %p119
      %p121 = scmp.ne.s32.totalorder %s110, %s111
      %p122 = scmp.eq.s32.totalorder %s24, 0
      %p123 = por %p121, %p122
      %p124 = scmp.ne.s32.totalorder %s110, %s111
      %p125 = scmp.eq.s32.totalorder %s25, 1
      %p126 = por %p124, %p125
      %p128 = scmp.ne.s32.totalorder %s111, %s127
      %p129 = scmp.eq.s32.totalorder %s25, 0
      %p130 = por %p128, %p129
      %s131 = ssub.s32 %s19, %s26
      %p132 = scmp.eq.s32.totalorder %s131, 0
      %s134 = sadd.s32 %s133, 1
      %s135 = scalar_select %p132, %s133, %s134
      %p138 = pneg %p132
      %p139 = scmp.eq.s32.totalorder %s19, 1
      %p140 = por %p138, %p139
      %p141 = scmp.ne.s32.totalorder %s133, %s136
      %p142 = scmp.eq.s32.totalorder %s19, 0
      %p143 = por %p141, %p142
      %p144 = scmp.ne.s32.totalorder %s133, %s136
      %p145 = scmp.eq.s32.totalorder %s24, 1
      %p146 = por %p144, %p145
      %p147 = scmp.ne.s32.totalorder %s136, %s137
      %p148 = scmp.eq.s32.totalorder %s24, 0
      %p149 = por %p147, %p148
      %p150 = scmp.ne.s32.totalorder %s136, %s137
      %p151 = scmp.eq.s32.totalorder %s25, 1
      %p152 = por %p150, %p151
      %p154 = scmp.ne.s32.totalorder %s137, %s153
      %p155 = scmp.eq.s32.totalorder %s25, 0
      %p156 = por %p154, %p155
      %s157 = ssub.s32 %s19, %s26
      %p158 = scmp.eq.s32.totalorder %s157, 0
      %s160 = sadd.s32 %s159, 1
      %s161 = scalar_select %p158, %s159, %s160
      %p164 = pneg %p158
      %p165 = scmp.eq.s32.totalorder %s19, 1
      %p166 = por %p164, %p165
      %p167 = scmp.ne.s32.totalorder %s159, %s162
      %p168 = scmp.eq.s32.totalorder %s19, 0
      %p169 = por %p167, %p168
      %p170 = scmp.ne.s32.totalorder %s159, %s162
      %p171 = scmp.eq.s32.totalorder %s24, 1
      %p172 = por %p170, %p171
      %p173 = scmp.ne.s32.totalorder %s162, %s163
      %p174 = scmp.eq.s32.totalorder %s24, 0
      %p175 = por %p173, %p174
      %p176 = scmp.ne.s32.totalorder %s162, %s163
      %p177 = scmp.eq.s32.totalorder %s25, 1
      %p178 = por %p176, %p177
      %p180 = scmp.ne.s32.totalorder %s163, %s179
      %p181 = scmp.eq.s32.totalorder %s25, 0
      %p182 = por %p180, %p181
      %s183 = ssub.s32 %s19, %s26
      %p184 = scmp.eq.s32.totalorder %s183, 0
      %s186 = sadd.s32 %s185, 1
      %s187 = scalar_select %p184, %s185, %s186
      %p190 = pneg %p184
      %p191 = scmp.eq.s32.totalorder %s19, 1
      %p192 = por %p190, %p191
      %p193 = scmp.ne.s32.totalorder %s185, %s188
      %p194 = scmp.eq.s32.totalorder %s19, 0
      %p195 = por %p193, %p194
      %p196 = scmp.ne.s32.totalorder %s185, %s188
      %p197 = scmp.eq.s32.totalorder %s24, 1
      %p198 = por %p196, %p197
      %p199 = scmp.ne.s32.totalorder %s188, %s189
      %p200 = scmp.eq.s32.totalorder %s24, 0
      %p201 = por %p199, %p200
      %p202 = scmp.ne.s32.totalorder %s188, %s189
      %p203 = scmp.eq.s32.totalorder %s25, 1
      %p204 = por %p202, %p203
      %p206 = scmp.ne.s32.totalorder %s189, %s205
      %p207 = scmp.eq.s32.totalorder %s25, 0
      %p208 = por %p206, %p207
      %p209 = scmp.le.s32.totalorder 1, %s19
      %p210 = scmp.lt.s32.totalorder %s19, 3
      %p211 = pnand %p209, %p210
      %p212 = pneg %p211
      // Predicated region
      $region9: #{tpu_custom_call.1} parent=5 // pred_check
        _
      $region10: #{tpu_custom_call.1} parent=5 // pred_check_branch
        %214 = sbr.rel (%p211) target = $region12
      $region11: #{tpu_custom_call.1} parent=5 // pred_region
        %s215 = ssub.s32 %s19, 1
      $region12: #{tpu_custom_call.1} parent=5 // pred_fallthru
        _
      %p216 = scmp.lt.s32.totalorder %s19, 2
      // Predicated region
      $region13: #{tpu_custom_call.1} parent=5 // pred_check
        %p217 = pneg %p216
      $region14: #{tpu_custom_call.1} parent=5 // pred_check_branch
        %219 = sbr.rel (%p217) target = $region16
      $region15: #{tpu_custom_call.1} parent=5 // pred_region
        // Predicated region
        $region17: #{tpu_custom_call.1} parent=15 // pred_check
          %p220 = pneg %p39
        $region18: #{tpu_custom_call.1} parent=15 // pred_check_branch
          %222 = sbr.rel (%p220) target = $region20
        $region19: #{tpu_custom_call.1} parent=15 // pred_region
          %s223 = smul.u32 32, %s19
          %s224 = ssub.s32 48, %s223
          %p225 = scmp.lt.s32.totalorder %s224, 32
          %s226 = scalar_select %p225, %s224, 32
          %s227 = smul.u32 128, %s226
          %p228 = scmp.lt.s32.totalorder %s223, 47
          %s229 = scalar_select %p228, %s223, 47
          %s230 = smul.addr %s229, 8
          %s231 = scalar_lea.vmem %s0, %s230
          %s232 = smul.u32 32, %s19
          %s233 = ssub.s32 48, %s232
          %p234 = scmp.lt.s32.totalorder %s233, 32
          %s235 = scalar_select %p234, %s233, 32
          %s236 = smul.u32 128, %s235
        $region20: #{tpu_custom_call.1} parent=15 // pred_fallthru
          _
        // Predicated region
        $region21: #{tpu_custom_call.1} parent=15 // pred_check
          %p237 = pneg %p65
        $region22: #{tpu_custom_call.1} parent=15 // pred_check_branch
          %239 = sbr.rel (%p237) target = $region24
        $region23: #{tpu_custom_call.1} parent=15 // pred_region
          %s240 = smul.u32 2, %s19
          %s241 = ssub.s32 3, %s240
          %p242 = scmp.lt.s32.totalorder %s241, 2
          %s243 = scalar_select %p242, %s241, 2
          %s244 = smul.u32 16, %s243
          %p245 = scmp.lt.s32.totalorder %s240, 2
          %s246 = scalar_select %p245, %s240, 2
          %s247 = scalar_lea.vmem %s1, %s246
          %s248 = smul.u32 2, %s19
          %s249 = ssub.s32 3, %s248
          %p250 = scmp.lt.s32.totalorder %s249, 2
          %s251 = scalar_select %p250, %s249, 2
          %s252 = smul.u32 16, %s251
        $region24: #{tpu_custom_call.1} parent=15 // pred_fallthru
          _
        // Predicated region
        $region25: #{tpu_custom_call.1} parent=15 // pred_check
          %p253 = pneg %p91
        $region26: #{tpu_custom_call.1} parent=15 // pred_check_branch
          %255 = sbr.rel (%p253) target = $region28
        $region27: #{tpu_custom_call.1} parent=15 // pred_region
          %s256 = smul.u32 32, %s19
          %s257 = ssub.s32 48, %s256
          %p258 = scmp.lt.s32.totalorder %s257, 32
          %s259 = scalar_select %p258, %s257, 32
          %s260 = smul.u32 128, %s259
          %p261 = scmp.lt.s32.totalorder %s256, 47
          %s262 = scalar_select %p261, %s256, 47
          %s263 = smul.addr %s262, 8
          %s264 = scalar_lea.vmem %s2, %s263
          %s265 = smul.u32 32, %s19
          %s266 = ssub.s32 48, %s265
          %p267 = scmp.lt.s32.totalorder %s266, 32
          %s268 = scalar_select %p267, %s266, 32
          %s269 = smul.u32 128, %s268
        $region28: #{tpu_custom_call.1} parent=15 // pred_fallthru
          _
        // Predicated region
        $region29: #{tpu_custom_call.1} parent=15 // pred_check
          %p270 = pneg %p117
        $region30: #{tpu_custom_call.1} parent=15 // pred_check_branch
          %272 = sbr.rel (%p270) target = $region32
        $region31: #{tpu_custom_call.1} parent=15 // pred_region
          %s273 = smul.u32 32, %s19
          %s274 = ssub.s32 48, %s273
          %p275 = scmp.lt.s32.totalorder %s274, 32
          %s276 = scalar_select %p275, %s274, 32
          %s277 = smul.u32 128, %s276
          %p278 = scmp.lt.s32.totalorder %s273, 47
          %s279 = scalar_select %p278, %s273, 47
          %s280 = smul.addr %s279, 8
          %s281 = scalar_lea.vmem %s3, %s280
          %s282 = smul.u32 32, %s19
          %s283 = ssub.s32 48, %s282
          %p284 = scmp.lt.s32.totalorder %s283, 32
          %s285 = scalar_select %p284, %s283, 32
          %s286 = smul.u32 128, %s285
        $region32: #{tpu_custom_call.1} parent=15 // pred_fallthru
          _
      $region16: #{tpu_custom_call.1} parent=5 // pred_fallthru
        _
      %p287 = scmp.le.s32.totalorder 1, %s19
      %p288 = scmp.lt.s32.totalorder %s19, 3
      %p289 = pnand %p287, %p288
      %p290 = pneg %p289
      // Predicated region
      $region33: #{tpu_custom_call.1} parent=5 // pred_check
        _
      $region34: #{tpu_custom_call.1} parent=5 // pred_check_branch
        %292 = sbr.rel (%p289) target = $region36
      $region35: #{tpu_custom_call.1} parent=5 // pred_region
        %s293 = ssub.s32 %s19, 1
        %s294 = smul.u32 32, %s24
        %s295 = ssub.s32 48, %s294
        %p296 = scmp.lt.s32.totalorder %s295, 32
        %s297 = scalar_select %p296, %s295, 32
        %s298 = smul.u32 128, %s297
        %p299 = scmp.lt.s32.totalorder %s294, 47
        %s300 = scalar_select %p299, %s294, 47
        %s301 = smul.addr %s300, 8
        %s302 = scalar_lea.vmem %s0, %s301
        %p303 = pneg %p45
        %p304 = pneg %p42
        %s305 = smul.u32 2, %s24
        %s306 = ssub.s32 3, %s305
        %p307 = scmp.lt.s32.totalorder %s306, 2
        %s308 = scalar_select %p307, %s306, 2
        %s309 = smul.u32 16, %s308
        %p310 = scmp.lt.s32.totalorder %s305, 2
        %s311 = scalar_select %p310, %s305, 2
        %s312 = scalar_lea.vmem %s1, %s311
        %p313 = pneg %p71
        %p314 = pneg %p68
        %s315 = smul.u32 32, %s24
        %s316 = ssub.s32 48, %s315
        %p317 = scmp.lt.s32.totalorder %s316, 32
        %s318 = scalar_select %p317, %s316, 32
        %s319 = smul.u32 128, %s318
        %p320 = scmp.lt.s32.totalorder %s315, 47
        %s321 = scalar_select %p320, %s315, 47
        %s322 = smul.addr %s321, 8
        %s323 = scalar_lea.vmem %s2, %s322
        %p324 = pneg %p97
        %p325 = pneg %p94
        %s326 = smul.u32 32, %s24
        %s327 = ssub.s32 48, %s326
        %p328 = scmp.lt.s32.totalorder %s327, 32
        %s329 = scalar_select %p328, %s327, 32
        %s330 = smul.u32 128, %s329
        %p331 = scmp.lt.s32.totalorder %s326, 47
        %s332 = scalar_select %p331, %s326, 47
        %s333 = smul.addr %s332, 8
        %s334 = scalar_lea.vmem %s3, %s333
        %p335 = pneg %p123
        %p336 = pneg %p120
        %p337 = pneg %p149
        %p338 = pneg %p146
        %s339 = sand.u32 %s136, 1
        %s340 = scalar_lea.sflag [#allocation3], %s339
        %s341 = sand.u32 %s136, 1
        %s342 = smul.addr %s341, 8
        %s343 = scalar_lea.vmem [#allocation2], %s342
        %p344 = pneg %p175
        %p345 = pneg %p172
        %s346 = sand.u32 %s24, 1
        %s347 = scalar_lea.sflag [#allocation5], %s346
        %s348 = sand.u32 %s162, 1
        %s349 = smul.addr %s348, 4
        %s350 = scalar_lea.vmem [#allocation4], %s349
        %p351 = pneg %p201
        %p352 = pneg %p198
        %s353 = sand.u32 %s24, 1
        %s354 = scalar_lea.sflag [#allocation5], %s353
        %s355 = sand.u32 %s188, 1
        %s356 = scalar_lea.vmem [#allocation6], %s355
        %s357 = smul.u32 32, %s24
        %s358 = ssub.s32 48, %s357
        %p359 = scmp.lt.s32.totalorder %s358, 32
        %s360 = scalar_select %p359, %s358, 32
        %s361 = smul.u32 128, %s360
        %p362 = scmp.lt.s32.totalorder %s357, 47
        %s363 = scalar_select %p362, %s357, 47
        %s364 = smul.addr %s363, 8
        %s365 = scalar_lea.vmem %s0, %s364
        %s366 = smul.u32 32, %s24
        %s367 = ssub.s32 48, %s366
        %p368 = scmp.lt.s32.totalorder %s367, 32
        %s369 = scalar_select %p368, %s367, 32
        %s370 = smul.u32 128, %s369
        %s371 = smul.u32 2, %s24
        %s372 = ssub.s32 3, %s371
        %p373 = scmp.lt.s32.totalorder %s372, 2
        %s374 = scalar_select %p373, %s372, 2
        %s375 = smul.u32 16, %s374
        %p376 = scmp.lt.s32.totalorder %s371, 2
        %s377 = scalar_select %p376, %s371, 2
        %s378 = scalar_lea.vmem %s1, %s377
        %s379 = smul.u32 2, %s24
        %s380 = ssub.s32 3, %s379
        %p381 = scmp.lt.s32.totalorder %s380, 2
        %s382 = scalar_select %p381, %s380, 2
        %s383 = smul.u32 16, %s382
        %s384 = smul.u32 32, %s24
        %s385 = ssub.s32 48, %s384
        %p386 = scmp.lt.s32.totalorder %s385, 32
        %s387 = scalar_select %p386, %s385, 32
        %s388 = smul.u32 128, %s387
        %p389 = scmp.lt.s32.totalorder %s384, 47
        %s390 = scalar_select %p389, %s384, 47
        %s391 = smul.addr %s390, 8
        %s392 = scalar_lea.vmem %s2, %s391
        %s393 = smul.u32 32, %s24
        %s394 = ssub.s32 48, %s393
        %p395 = scmp.lt.s32.totalorder %s394, 32
        %s396 = scalar_select %p395, %s394, 32
        %s397 = smul.u32 128, %s396
        %s398 = smul.u32 32, %s24
        %s399 = ssub.s32 48, %s398
        %p400 = scmp.lt.s32.totalorder %s399, 32
        %s401 = scalar_select %p400, %s399, 32
        %s402 = smul.u32 128, %s401
        %p403 = scmp.lt.s32.totalorder %s398, 47
        %s404 = scalar_select %p403, %s398, 47
        %s405 = smul.addr %s404, 8
        %s406 = scalar_lea.vmem %s3, %s405
        %s407 = smul.u32 32, %s24
        %s408 = ssub.s32 48, %s407
        %p409 = scmp.lt.s32.totalorder %s408, 32
        %s410 = scalar_select %p409, %s408, 32
        %s411 = smul.u32 128, %s410
        %v412 = vld [vmem:[%s365] sm:$0xff]
        %v413 = vld [vmem:[%s365 + $0x8] sm:$0xff]
        %v414 = vld [vmem:[%s365 + $0x10] sm:$0xff]
        %v415 = vld [vmem:[%s365 + $0x18] sm:$0xff]
        %v416 = vld [vmem:[%s365 + $0x20] sm:$0xff]
        %v417 = vld [vmem:[%s365 + $0x28] sm:$0xff]
        %v418 = vld [vmem:[%s365 + $0x30] sm:$0xff]
        %v419 = vld [vmem:[%s365 + $0x38] sm:$0xff]
        %v420 = vld [vmem:[%s365 + $0x40] sm:$0xff]
        %v421 = vld [vmem:[%s365 + $0x48] sm:$0xff]
        %v422 = vld [vmem:[%s365 + $0x50] sm:$0xff]
        %v423 = vld [vmem:[%s365 + $0x58] sm:$0xff]
        %v424 = vld [vmem:[%s365 + $0x60] sm:$0xff]
        %v425 = vld [vmem:[%s365 + $0x68] sm:$0xff]
        %v426 = vld [vmem:[%s365 + $0x70] sm:$0xff]
        %v427 = vld [vmem:[%s365 + $0x78] sm:$0xff]
        %v428 = vld [vmem:[%s365 + $0x80] sm:$0xff]
        %v429 = vld [vmem:[%s365 + $0x88] sm:$0xff]
        %v430 = vld [vmem:[%s365 + $0x90] sm:$0xff]
        %v431 = vld [vmem:[%s365 + $0x98] sm:$0xff]
        %v432 = vld [vmem:[%s365 + $0xa0] sm:$0xff]
        %v433 = vld [vmem:[%s365 + $0xa8] sm:$0xff]
        %v434 = vld [vmem:[%s365 + $0xb0] sm:$0xff]
        %v435 = vld [vmem:[%s365 + $0xb8] sm:$0xff]
        %v436 = vld [vmem:[%s365 + $0xc0] sm:$0xff]
        %v437 = vld [vmem:[%s365 + $0xc8] sm:$0xff]
        %v438 = vld [vmem:[%s365 + $0xd0] sm:$0xff]
        %v439 = vld [vmem:[%s365 + $0xd8] sm:$0xff]
        %v440 = vld [vmem:[%s365 + $0xe0] sm:$0xff]
        %v441 = vld [vmem:[%s365 + $0xe8] sm:$0xff]
        %v442 = vld [vmem:[%s365 + $0xf0] sm:$0xff]
        %v443 = vld [vmem:[%s365 + $0xf8] sm:$0xff]
        %444 = vxpose.xlu0.b32.start [1/16] %v412, 128
        %445 = vxpose.xlu0.b32.cont [2/16] %v413, 128
        %446 = vxpose.xlu0.b32.cont [3/16] %v414, 128
        %447 = vxpose.xlu0.b32.cont [4/16] %v415, 128
        %448 = vxpose.xlu0.b32.cont [5/16] %v416, 128
        %449 = vxpose.xlu0.b32.cont [6/16] %v417, 128
        %450 = vxpose.xlu0.b32.cont [7/16] %v418, 128
        %451 = vxpose.xlu0.b32.cont [8/16] %v419, 128
        %452 = vxpose.xlu0.b32.cont [9/16] %v420, 128
        %453 = vxpose.xlu0.b32.cont [10/16] %v421, 128
        %454 = vxpose.xlu0.b32.cont [11/16] %v422, 128
        %455 = vxpose.xlu0.b32.cont [12/16] %v423, 128
        %456 = vxpose.xlu0.b32.cont [13/16] %v424, 128
        %457 = vxpose.xlu0.b32.cont [14/16] %v425, 128
        %458 = vxpose.xlu0.b32.cont [15/16] %v426, 128
        %459 = vxpose.xlu0.b32.end [16/16] %v427, 128
        %v460 = vpop.trf.xlu0
        %v461 = vpop.trf.xlu0
        %v462 = vpop.trf.xlu0
        %v463 = vpop.trf.xlu0
        %v464 = vpop.trf.xlu0
        %v465 = vpop.trf.xlu0
        %v466 = vpop.trf.xlu0
        %v467 = vpop.trf.xlu0
        %v468 = vpop.trf.xlu0
        %v469 = vpop.trf.xlu0
        %v470 = vpop.trf.xlu0
        %v471 = vpop.trf.xlu0
        %v472 = vpop.trf.xlu0
        %v473 = vpop.trf.xlu0
        %v474 = vpop.trf.xlu0
        %v475 = vpop.trf.xlu0
        %476 = vxpose.xlu0.b32.start [1/16] %v428, 128
        %477 = vxpose.xlu0.b32.cont [2/16] %v429, 128
        %478 = vxpose.xlu0.b32.cont [3/16] %v430, 128
        %479 = vxpose.xlu0.b32.cont [4/16] %v431, 128
        %480 = vxpose.xlu0.b32.cont [5/16] %v432, 128
        %481 = vxpose.xlu0.b32.cont [6/16] %v433, 128
        %482 = vxpose.xlu0.b32.cont [7/16] %v434, 128
        %483 = vxpose.xlu0.b32.cont [8/16] %v435, 128
        %484 = vxpose.xlu0.b32.cont [9/16] %v436, 128
        %485 = vxpose.xlu0.b32.cont [10/16] %v437, 128
        %486 = vxpose.xlu0.b32.cont [11/16] %v438, 128
        %487 = vxpose.xlu0.b32.cont [12/16] %v439, 128
        %488 = vxpose.xlu0.b32.cont [13/16] %v440, 128
        %489 = vxpose.xlu0.b32.cont [14/16] %v441, 128
        %490 = vxpose.xlu0.b32.cont [15/16] %v442, 128
        %491 = vxpose.xlu0.b32.end [16/16] %v443, 128
        %v492 = vpop.trf.xlu0
        %v493 = vpop.trf.xlu0
        %v494 = vpop.trf.xlu0
        %v495 = vpop.trf.xlu0
        %v496 = vpop.trf.xlu0
        %v497 = vpop.trf.xlu0
        %v498 = vpop.trf.xlu0
        %v499 = vpop.trf.xlu0
        %v500 = vpop.trf.xlu0
        %v501 = vpop.trf.xlu0
        %v502 = vpop.trf.xlu0
        %v503 = vpop.trf.xlu0
        %v504 = vpop.trf.xlu0
        %v505 = vpop.trf.xlu0
        %v506 = vpop.trf.xlu0
        %v507 = vpop.trf.xlu0
        %v508 = vld [vmem:[%s392] sm:$0xff]
        %v509 = vld [vmem:[%s392 + $0x8] sm:$0xff]
        %v510 = vld [vmem:[%s392 + $0x10] sm:$0xff]
        %v511 = vld [vmem:[%s392 + $0x18] sm:$0xff]
        %v512 = vld [vmem:[%s392 + $0x20] sm:$0xff]
        %v513 = vld [vmem:[%s392 + $0x28] sm:$0xff]
        %v514 = vld [vmem:[%s392 + $0x30] sm:$0xff]
        %v515 = vld [vmem:[%s392 + $0x38] sm:$0xff]
        %v516 = vld [vmem:[%s392 + $0x40] sm:$0xff]
        %v517 = vld [vmem:[%s392 + $0x48] sm:$0xff]
        %v518 = vld [vmem:[%s392 + $0x50] sm:$0xff]
        %v519 = vld [vmem:[%s392 + $0x58] sm:$0xff]
        %v520 = vld [vmem:[%s392 + $0x60] sm:$0xff]
        %v521 = vld [vmem:[%s392 + $0x68] sm:$0xff]
        %v522 = vld [vmem:[%s392 + $0x70] sm:$0xff]
        %v523 = vld [vmem:[%s392 + $0x78] sm:$0xff]
        %v524 = vld [vmem:[%s392 + $0x80] sm:$0xff]
        %v525 = vld [vmem:[%s392 + $0x88] sm:$0xff]
        %v526 = vld [vmem:[%s392 + $0x90] sm:$0xff]
        %v527 = vld [vmem:[%s392 + $0x98] sm:$0xff]
        %v528 = vld [vmem:[%s392 + $0xa0] sm:$0xff]
        %v529 = vld [vmem:[%s392 + $0xa8] sm:$0xff]
        %v530 = vld [vmem:[%s392 + $0xb0] sm:$0xff]
        %v531 = vld [vmem:[%s392 + $0xb8] sm:$0xff]
        %v532 = vld [vmem:[%s392 + $0xc0] sm:$0xff]
        %v533 = vld [vmem:[%s392 + $0xc8] sm:$0xff]
        %v534 = vld [vmem:[%s392 + $0xd0] sm:$0xff]
        %v535 = vld [vmem:[%s392 + $0xd8] sm:$0xff]
        %v536 = vld [vmem:[%s392 + $0xe0] sm:$0xff]
        %v537 = vld [vmem:[%s392 + $0xe8] sm:$0xff]
        %v538 = vld [vmem:[%s392 + $0xf0] sm:$0xff]
        %v539 = vld [vmem:[%s392 + $0xf8] sm:$0xff]
        %540 = vxpose.xlu0.b32.start [1/16] %v508, 128
        %541 = vxpose.xlu0.b32.cont [2/16] %v509, 128
        %542 = vxpose.xlu0.b32.cont [3/16] %v510, 128
        %543 = vxpose.xlu0.b32.cont [4/16] %v511, 128
        %544 = vxpose.xlu0.b32.cont [5/16] %v512, 128
        %545 = vxpose.xlu0.b32.cont [6/16] %v513, 128
        %546 = vxpose.xlu0.b32.cont [7/16] %v514, 128
        %547 = vxpose.xlu0.b32.cont [8/16] %v515, 128
        %548 = vxpose.xlu0.b32.cont [9/16] %v516, 128
        %549 = vxpose.xlu0.b32.cont [10/16] %v517, 128
        %550 = vxpose.xlu0.b32.cont [11/16] %v518, 128
        %551 = vxpose.xlu0.b32.cont [12/16] %v519, 128
        %552 = vxpose.xlu0.b32.cont [13/16] %v520, 128
        %553 = vxpose.xlu0.b32.cont [14/16] %v521, 128
        %554 = vxpose.xlu0.b32.cont [15/16] %v522, 128
        %555 = vxpose.xlu0.b32.end [16/16] %v523, 128
        %v556 = vpop.trf.xlu0
        %v557 = vpop.trf.xlu0
        %v558 = vpop.trf.xlu0
        %v559 = vpop.trf.xlu0
        %v560 = vpop.trf.xlu0
        %v561 = vpop.trf.xlu0
        %v562 = vpop.trf.xlu0
        %v563 = vpop.trf.xlu0
        %v564 = vpop.trf.xlu0
        %v565 = vpop.trf.xlu0
        %v566 = vpop.trf.xlu0
        %v567 = vpop.trf.xlu0
        %v568 = vpop.trf.xlu0
        %v569 = vpop.trf.xlu0
        %v570 = vpop.trf.xlu0
        %v571 = vpop.trf.xlu0
        %572 = vxpose.xlu0.b32.start [1/16] %v524, 128
        %573 = vxpose.xlu0.b32.cont [2/16] %v525, 128
        %574 = vxpose.xlu0.b32.cont [3/16] %v526, 128
        %575 = vxpose.xlu0.b32.cont [4/16] %v527, 128
        %576 = vxpose.xlu0.b32.cont [5/16] %v528, 128
        %577 = vxpose.xlu0.b32.cont [6/16] %v529, 128
        %578 = vxpose.xlu0.b32.cont [7/16] %v530, 128
        %579 = vxpose.xlu0.b32.cont [8/16] %v531, 128
        %580 = vxpose.xlu0.b32.cont [9/16] %v532, 128
        %581 = vxpose.xlu0.b32.cont [10/16] %v533, 128
        %582 = vxpose.xlu0.b32.cont [11/16] %v534, 128
        %583 = vxpose.xlu0.b32.cont [12/16] %v535, 128
        %584 = vxpose.xlu0.b32.cont [13/16] %v536, 128
        %585 = vxpose.xlu0.b32.cont [14/16] %v537, 128
        %586 = vxpose.xlu0.b32.cont [15/16] %v538, 128
        %587 = vxpose.xlu0.b32.end [16/16] %v539, 128
        %v588 = vpop.trf.xlu0
        %v589 = vpop.trf.xlu0
        %v590 = vpop.trf.xlu0
        %v591 = vpop.trf.xlu0
        %v592 = vpop.trf.xlu0
        %v593 = vpop.trf.xlu0
        %v594 = vpop.trf.xlu0
        %v595 = vpop.trf.xlu0
        %v596 = vpop.trf.xlu0
        %v597 = vpop.trf.xlu0
        %v598 = vpop.trf.xlu0
        %v599 = vpop.trf.xlu0
        %v600 = vpop.trf.xlu0
        %v601 = vpop.trf.xlu0
        %v602 = vpop.trf.xlu0
        %v603 = vpop.trf.xlu0
        %v604 = vld [vmem:[%s406] sm:$0xff]
        %v605 = vld [vmem:[%s406 + $0x8] sm:$0xff]
        %v606 = vld [vmem:[%s406 + $0x10] sm:$0xff]
        %v607 = vld [vmem:[%s406 + $0x18] sm:$0xff]
        %v608 = vld [vmem:[%s406 + $0x20] sm:$0xff]
        %v609 = vld [vmem:[%s406 + $0x28] sm:$0xff]
        %v610 = vld [vmem:[%s406 + $0x30] sm:$0xff]
        %v611 = vld [vmem:[%s406 + $0x38] sm:$0xff]
        %v612 = vld [vmem:[%s406 + $0x40] sm:$0xff]
        %v613 = vld [vmem:[%s406 + $0x48] sm:$0xff]
        %v614 = vld [vmem:[%s406 + $0x50] sm:$0xff]
        %v615 = vld [vmem:[%s406 + $0x58] sm:$0xff]
        %v616 = vld [vmem:[%s406 + $0x60] sm:$0xff]
        %v617 = vld [vmem:[%s406 + $0x68] sm:$0xff]
        %v618 = vld [vmem:[%s406 + $0x70] sm:$0xff]
        %v619 = vld [vmem:[%s406 + $0x78] sm:$0xff]
        %v620 = vld [vmem:[%s406 + $0x80] sm:$0xff]
        %v621 = vld [vmem:[%s406 + $0x88] sm:$0xff]
        %v622 = vld [vmem:[%s406 + $0x90] sm:$0xff]
        %v623 = vld [vmem:[%s406 + $0x98] sm:$0xff]
        %v624 = vld [vmem:[%s406 + $0xa0] sm:$0xff]
        %v625 = vld [vmem:[%s406 + $0xa8] sm:$0xff]
        %v626 = vld [vmem:[%s406 + $0xb0] sm:$0xff]
        %v627 = vld [vmem:[%s406 + $0xb8] sm:$0xff]
        %v628 = vld [vmem:[%s406 + $0xc0] sm:$0xff]
        %v629 = vld [vmem:[%s406 + $0xc8] sm:$0xff]
        %v630 = vld [vmem:[%s406 + $0xd0] sm:$0xff]
        %v631 = vld [vmem:[%s406 + $0xd8] sm:$0xff]
        %v632 = vld [vmem:[%s406 + $0xe0] sm:$0xff]
        %v633 = vld [vmem:[%s406 + $0xe8] sm:$0xff]
        %v634 = vld [vmem:[%s406 + $0xf0] sm:$0xff]
        %v635 = vld [vmem:[%s406 + $0xf8] sm:$0xff]
        %636 = vxpose.xlu0.b32.start [1/16] %v604, 128
        %637 = vxpose.xlu0.b32.cont [2/16] %v605, 128
        %638 = vxpose.xlu0.b32.cont [3/16] %v606, 128
        %639 = vxpose.xlu0.b32.cont [4/16] %v607, 128
        %640 = vxpose.xlu0.b32.cont [5/16] %v608, 128
        %641 = vxpose.xlu0.b32.cont [6/16] %v609, 128
        %642 = vxpose.xlu0.b32.cont [7/16] %v610, 128
        %643 = vxpose.xlu0.b32.cont [8/16] %v611, 128
        %644 = vxpose.xlu0.b32.cont [9/16] %v612, 128
        %645 = vxpose.xlu0.b32.cont [10/16] %v613, 128
        %646 = vxpose.xlu0.b32.cont [11/16] %v614, 128
        %647 = vxpose.xlu0.b32.cont [12/16] %v615, 128
        %648 = vxpose.xlu0.b32.cont [13/16] %v616, 128
        %649 = vxpose.xlu0.b32.cont [14/16] %v617, 128
        %650 = vxpose.xlu0.b32.cont [15/16] %v618, 128
        %651 = vxpose.xlu0.b32.end [16/16] %v619, 128
        %v652 = vpop.trf.xlu0
        %v653 = vpop.trf.xlu0
        %v654 = vpop.trf.xlu0
        %v655 = vpop.trf.xlu0
        %v656 = vpop.trf.xlu0
        %v657 = vpop.trf.xlu0
        %v658 = vpop.trf.xlu0
        %v659 = vpop.trf.xlu0
        %v660 = vpop.trf.xlu0
        %v661 = vpop.trf.xlu0
        %v662 = vpop.trf.xlu0
        %v663 = vpop.trf.xlu0
        %v664 = vpop.trf.xlu0
        %v665 = vpop.trf.xlu0
        %v666 = vpop.trf.xlu0
        %v667 = vpop.trf.xlu0
        %668 = vxpose.xlu0.b32.start [1/16] %v620, 128
        %669 = vxpose.xlu0.b32.cont [2/16] %v621, 128
        %670 = vxpose.xlu0.b32.cont [3/16] %v622, 128
        %671 = vxpose.xlu0.b32.cont [4/16] %v623, 128
        %672 = vxpose.xlu0.b32.cont [5/16] %v624, 128
        %673 = vxpose.xlu0.b32.cont [6/16] %v625, 128
        %674 = vxpose.xlu0.b32.cont [7/16] %v626, 128
        %675 = vxpose.xlu0.b32.cont [8/16] %v627, 128
        %676 = vxpose.xlu0.b32.cont [9/16] %v628, 128
        %677 = vxpose.xlu0.b32.cont [10/16] %v629, 128
        %678 = vxpose.xlu0.b32.cont [11/16] %v630, 128
        %679 = vxpose.xlu0.b32.cont [12/16] %v631, 128
        %680 = vxpose.xlu0.b32.cont [13/16] %v632, 128
        %681 = vxpose.xlu0.b32.cont [14/16] %v633, 128
        %682 = vxpose.xlu0.b32.cont [15/16] %v634, 128
        %683 = vxpose.xlu0.b32.end [16/16] %v635, 128
        %v684 = vpop.trf.xlu0
        %v685 = vpop.trf.xlu0
        %v686 = vpop.trf.xlu0
        %v687 = vpop.trf.xlu0
        %v688 = vpop.trf.xlu0
        %v689 = vpop.trf.xlu0
        %v690 = vpop.trf.xlu0
        %v691 = vpop.trf.xlu0
        %v692 = vpop.trf.xlu0
        %v693 = vpop.trf.xlu0
        %v694 = vpop.trf.xlu0
        %v695 = vpop.trf.xlu0
        %v696 = vpop.trf.xlu0
        %v697 = vpop.trf.xlu0
        %v698 = vpop.trf.xlu0
        %v699 = vpop.trf.xlu0
        %v700 = vld [vmem:[%s378] sm:$0x3]
        %v701 = vlaneseq
        %v702 = vand.u32 %v701, 127
        %v703 = vadd.s32 %v702, 128
        %s704 = smul.u32 %s24, 256
        %v705 = vstv %s704
        %v706 = vadd.s32 %v705, %v702
        %v707 = vadd.s32 %v705, %v703
        %vm708 = vcmp.lt.s32.totalorder %v706, 384
        %vm709 = vcmp.lt.s32.totalorder %v707, 384
        %vm710 = vcmp.gt.s32.totalorder %v700, 0
        %v711 = vsel %vm708, 1, 0
        %v712 = vsel %vm709, 1, 0
        %v713 = vcombine.low %v711, %v712
        %v715 = vunpack.c.l.s4 1966171168
        %v716 = vunpack.c.0.s8 %v715
        %v717 = vlaneseq
        %v718 = vshrl.u32 %v717, 7
        %v719 = vsub.s32 %v716, %v718
        %v720 = vrot.slane %v713, %v719
        %v722 = vunpack.c.l.s4 1966171168
        %v723 = vunpack.c.0.s8 %v722
        %v724 = vlaneseq
        %v725 = vshrl.u32 %v724, 7
        %v726 = vsub.s32 %v723, %v725
        %v727 = vrot.slane %v720, %v726
        %vm728 = vcmp.ne.s32.totalorder %v727, 0
        %vm729 = vmand %vm710, %vm728
        %v730 = vsub.f32 %v556, %v652
        %v731 = vsub.f32 %v588, %v684
        %v732 = vand.u32 2147483647, %v730
        %v733 = vand.u32 2147483647, %v731
        %vm734 = vcmp.lt.f32.partialorder %v732, 1.0
        %vm735 = vcmp.lt.f32.partialorder %v733, 1.0
        %v736 = vmul.f32 %v732, 0.5
        %v737 = vmul.f32 %v733, 0.5
        %v738 = vmul.f32 %v736, %v732
        %v739 = vmul.f32 %v737, %v733
        %v740 = vsub.f32 %v732, 0.5
        %v741 = vsub.f32 %v733, 0.5
        %v742 = vsel %vm734, %v738, %v740
        %v743 = vsel %vm735, %v739, %v741
        %v744 = vsel %vm729, 1, 0
        %v745 = vlaneseq
        %v746 = vshrl.u32 %v745, 7
        %v747 = vsub.s32 0, %v746
        %v748 = vrot.slane %v744, %v747
        %v749 = vlaneseq
        %v750 = vshrl.u32 %v749, 7
        %v751 = vsub.s32 1, %v750
        %v752 = vrot.slane %v744, %v751
        %vm753 = vcmp.eq.s32.totalorder %v748, 1
        %vm754 = vcmp.eq.s32.totalorder %v752, 1
        %v755 = vsel %vm753, %v742, 0.0
        %v756 = vsel %vm754, %v743, 0.0
        %v757 = vlaneseq
        %v758 = vshrl.u32 %v757, 7
        %v759 = vlaneseq
        %v760 = vshrl.u32 %v759, 7
        %v761 = vsub.s32 0, %v760
        %v762 = vrot.slane %v700, %v761
        %v763 = vlaneseq
        %v764 = vshrl.u32 %v763, 7
        %v765 = vsub.s32 1, %v764
        %v766 = vrot.slane %v700, %v765
        %vm767 = vcmp.eq.s32.totalorder %v758, %v762
        %vm768 = vcmp.eq.s32.totalorder %v758, %v766
        %vm769 = vmand %vm753, %vm767
        %vm770 = vmand %vm754, %vm768
        %v771 = vsub.f32 1.0, %v460
        %v772 = vsub.f32 1.0, %v492
        %v773 = vsel %vm769, %v771, %v460
        %v774 = vsel %vm770, %v772, %v492
        %v775 = vmul.f32 %v773, %v773
        %v776 = vmul.f32 %v774, %v774
        %v777 = vadd.f32 %v460, 1e-06
        %v778 = vadd.f32 %v492, 1e-06
        %v779 = vadd.f32 %v771, 1e-06
        %v780 = vadd.f32 %v772, 1e-06
        %v781 = vsel %vm769, %v777, %v779
        %v782 = vsel %vm770, %v778, %v780
        %v783 = vlog2.pop %v781
        %v784 = vmul.f32 %v783, 0.6931472
        %v785 = vlog2.pop %v782
        %v786 = vmul.f32 %v785, 0.6931472
        %v787 = vsub.f32 0.0, %v784
        %v788 = vsub.f32 0.0, %v786
        %v789 = vmul.f32 %v775, 0.5
        %v790 = vmul.f32 %v776, 0.5
        %v791 = vmul.f32 %v789, %v787
        %v792 = vmul.f32 %v790, %v788
        %vm793 = vcmp.eq.s32.totalorder %v711, 1
        %vm794 = vcmp.eq.s32.totalorder %v712, 1
        %v795 = vsel %vm793, %v791, 0.0
        %v796 = vsel %vm794, %v792, 0.0
        %v797 = vadd.f32 %v795, %v796
        %798 = vst [vmem:[%s343] sm:$0xff] %v797
        %v799 = vadd.f32 %v755, %v756
        %800 = vst [vmem:[%s350] sm:$0xf] %v799
        %v801 = vcvt.s32.f32 %v744
        %v803 = vrot.slane %v801, 1
        %v805 = vadd.f32 %v801, %v803
        %806 = vst [vmem:[%s356] sm:$0x1] %v805
        %s807 = sand.u32 %s136, 1
        %s808 = scalar_lea.sflag [#allocation3], %s807
        %s809 = sand.u32 %s136, 1
        %s810 = smul.addr %s809, 8
        %s811 = scalar_lea.vmem [#allocation2], %s810
        %s812 = sand.u32 %s24, 1
        %s813 = scalar_lea.sflag [#allocation5], %s812
        %s814 = sand.u32 %s162, 1
        %s815 = smul.addr %s814, 4
        %s816 = scalar_lea.vmem [#allocation4], %s815
        %s817 = sand.u32 %s24, 1
        %s818 = scalar_lea.sflag [#allocation5], %s817
        %s819 = sand.u32 %s188, 1
        %s820 = scalar_lea.vmem [#allocation6], %s819
        // Predicated region
        $region37: #{tpu_custom_call.1} parent=35 // pred_check
          %p821 = pneg %p146
        $region38: #{tpu_custom_call.1} parent=35 // pred_check_branch
          %823 = sbr.rel (%p821) target = $region40
        $region39: #{tpu_custom_call.1} parent=35 // pred_region
          %s825 = ssub.s32 128, 128
          %826 = vsyncadd %s808, %s825
          %s827 = smul.addr %s24, 128
          %s828 = scalar_lea.hbm %s4, %s827
          %s830 = sshll.u32 %s811, 4
          %s831 = int_to_ptr.vmem [resolvable:$true] %s830
          %833 = dma.vmem_to_hbm [thread:$0]  %s831, 128, %s828, %s808
        $region40: #{tpu_custom_call.1} parent=35 // pred_fallthru
          _
        // Predicated region
        $region41: #{tpu_custom_call.1} parent=35 // pred_check
          %p834 = pneg %p172
        $region42: #{tpu_custom_call.1} parent=35 // pred_check_branch
          %836 = sbr.rel (%p834) target = $region44
        $region43: #{tpu_custom_call.1} parent=35 // pred_region
          %s838 = ssub.s32 64, 64
          %839 = vsyncadd %s813, %s838
          %s840 = smul.addr %s24, 64
          %s841 = scalar_lea.hbm %s5, %s840
          %s843 = sshll.u32 %s816, 4
          %s844 = int_to_ptr.vmem [resolvable:$true] %s843
          %846 = dma.vmem_to_hbm [thread:$0]  %s844, 64, %s841, %s813
        $region44: #{tpu_custom_call.1} parent=35 // pred_fallthru
          _
        // Predicated region
        $region45: #{tpu_custom_call.1} parent=35 // pred_check
          %p847 = pneg %p198
        $region46: #{tpu_custom_call.1} parent=35 // pred_check_branch
          %849 = sbr.rel (%p847) target = $region48
        $region47: #{tpu_custom_call.1} parent=35 // pred_region
          %s851 = ssub.s32 16, 16
          %852 = vsyncadd %s818, %s851
          %s853 = smul.addr %s24, 16
          %s854 = scalar_lea.hbm %s6, %s853
          %s856 = sshll.u32 %s820, 4
          %s857 = int_to_ptr.vmem [resolvable:$true] %s856
          %859 = dma.vmem_to_hbm [thread:$0]  %s857, 16, %s854, %s818
        $region48: #{tpu_custom_call.1} parent=35 // pred_fallthru
          _
      $region36: #{tpu_custom_call.1} parent=5 // pred_fallthru
        _
      %p860 = scmp.le.s32.totalorder 2, %s19
      // Predicated region
      $region49: #{tpu_custom_call.1} parent=5 // pred_check
        %p861 = pneg %p860
      $region50: #{tpu_custom_call.1} parent=5 // pred_check_branch
        %863 = sbr.rel (%p861) target = $region52
      $region51: #{tpu_custom_call.1} parent=5 // pred_region
        %s864 = ssub.s32 %s19, 2
        // Predicated region
        $region53: #{tpu_custom_call.1} parent=51 // pred_check
          %p865 = pneg %p152
        $region54: #{tpu_custom_call.1} parent=51 // pred_check_branch
          %867 = sbr.rel (%p865) target = $region56
        $region55: #{tpu_custom_call.1} parent=51 // pred_region
          %s868 = sand.u32 %s137, 1
          %s869 = scalar_lea.sflag [#allocation3], %s868
          %s870 = sand.u32 %s137, 1
          %s871 = smul.addr %s870, 8
          %s872 = scalar_lea.vmem [#allocation2], %s871
          %873 = dma.done %s869, 128
        $region56: #{tpu_custom_call.1} parent=51 // pred_fallthru
          _
        // Predicated region
        $region57: #{tpu_custom_call.1} parent=51 // pred_check
          %p874 = pneg %p178
        $region58: #{tpu_custom_call.1} parent=51 // pred_check_branch
          %876 = sbr.rel (%p874) target = $region60
        $region59: #{tpu_custom_call.1} parent=51 // pred_region
          %s877 = sand.u32 %s25, 1
          %s878 = scalar_lea.sflag [#allocation5], %s877
          %s879 = sand.u32 %s163, 1
          %s880 = smul.addr %s879, 4
          %s881 = scalar_lea.vmem [#allocation4], %s880
          %882 = dma.done %s878, 64
        $region60: #{tpu_custom_call.1} parent=51 // pred_fallthru
          _
        // Predicated region
        $region61: #{tpu_custom_call.1} parent=51 // pred_check
          %p883 = pneg %p204
        $region62: #{tpu_custom_call.1} parent=51 // pred_check_branch
          %885 = sbr.rel (%p883) target = $region64
        $region63: #{tpu_custom_call.1} parent=51 // pred_region
          %s886 = sand.u32 %s25, 1
          %s887 = scalar_lea.sflag [#allocation5], %s886
          %s888 = sand.u32 %s189, 1
          %s889 = scalar_lea.vmem [#allocation6], %s888
          %890 = dma.done %s887, 16
        $region64: #{tpu_custom_call.1} parent=51 // pred_fallthru
          _
      $region52: #{tpu_custom_call.1} parent=5 // pred_fallthru
        _
    $region6: #{tpu_custom_call.1} parent=1 // loop_footer
      %s23 = sadd.s32 1, %s19
    $region7: #{tpu_custom_call.1} parent=1 // loop_footer_branch
      %18 = sbr.rel target = $region3
    $region8: #{tpu_custom_call.1} parent=1 // loop_exit
      _
    %891 = vsyncpa [#allocation3], 1
    %s892 = scalar_lea.sflag [#allocation3], 1
    %893 = vsyncpa %s892, 1
    %894 = vsyncpa [#allocation5], 1
    %s895 = scalar_lea.sflag [#allocation5], 1
    %896 = vsyncpa %s895, 1

</llo_original>
